<compile_context>
chip_gen: v6e
topology: v6e:2x2x1
jax: 0.10.0
libtpu: 0.0.40
codegen_flags: <defaults>
</compile_context>

<pallas_src>
import functools

import jax
import jax.numpy as jnp
from jax.experimental import pallas as pl
from jax.experimental.pallas import tpu as pltpu


# ----------------------------------------------------------------------------
# Kernel: fused 4-layer policy MLP + 4-layer value MLP.
# ----------------------------------------------------------------------------
def _fused_net_kernel(x_ref,
                      pw1, pb1, pw2, pb2, pw3, pb3, pw4, pb4,
                      vw1, vb1, vw2, vb2, vw3, vb3, vw4, vb4,
                      pi_ref, v_ref, *, apply_softmax):
    x = x_ref[...]

    # ---- policy head: S -> 128 -> 64 -> 64 -> A, optional softmax ----------
    h = jnp.maximum(
        jnp.dot(x, pw1[...], preferred_element_type=jnp.float32) + pb1[...], 0.0)
    h = jnp.maximum(
        jnp.dot(h, pw2[...], preferred_element_type=jnp.float32) + pb2[...], 0.0)
    h = jnp.maximum(
        jnp.dot(h, pw3[...], preferred_element_type=jnp.float32) + pb3[...], 0.0)
    logits = jnp.dot(h, pw4[...], preferred_element_type=jnp.float32) + pb4[...]
    if apply_softmax:
        m = jnp.max(logits, axis=-1, keepdims=True)
        e = jnp.exp(logits - m)
        s = jnp.sum(e, axis=-1, keepdims=True)
        logits = e * pl.reciprocal(s, approx=True)
    pi_ref[...] = logits.astype(pi_ref.dtype)

    # ---- value head: S -> 64 -> 64 -> 64 -> 1 (padded from 50, zeros) ------
    g = jnp.maximum(
        jnp.dot(x, vw1[...], preferred_element_type=jnp.float32) + vb1[...], 0.0)
    g = jnp.maximum(
        jnp.dot(g, vw2[...], preferred_element_type=jnp.float32) + vb2[...], 0.0)
    g = jnp.maximum(
        jnp.dot(g, vw3[...], preferred_element_type=jnp.float32) + vb3[...], 0.0)
    v = jnp.dot(g, vw4[...], preferred_element_type=jnp.float32) + vb4[...]
    v_ref[...] = v.astype(v_ref.dtype)


def _round_up(n, m):
    return ((n + m - 1) // m) * m


# ----------------------------------------------------------------------------
# Wrapper: batch-tiled grid, weights resident in VMEM across grid steps.
# ----------------------------------------------------------------------------
@functools.partial(jax.jit, static_argnums=(2, 3))
def _fused_forward(x, params, action_size, apply_softmax):
    batch, state_size = x.shape

    # Batch tile: big enough to amortize per-step overhead, small enough to be
    # trivial in VMEM (total working set << 1 MiB).  Multiple of 8 (sublane).
    tb = min(512, _round_up(batch, 8))
    padded = _round_up(batch, tb)
    if padded != batch:
        x = jnp.pad(x, ((0, padded - batch), (0, 0)))
    grid = (padded // tb,)

    def row_spec(width):
        return pl.BlockSpec((tb, width), lambda i: (i, 0))

    # Weights/biases: full-array blocks, constant block index => loaded once,
    # VMEM-resident across all grid steps.
    w_specs = [pl.BlockSpec(p.shape, lambda i: (0, 0)) for p in params]

    kernel = functools.partial(_fused_net_kernel, apply_softmax=apply_softmax)
    pi, v = pl.pallas_call(
        kernel,
        out_shape=(jax.ShapeDtypeStruct((padded, action_size), jnp.float32),
                   jax.ShapeDtypeStruct((padded, 1), jnp.float32)),
        grid=grid,
        in_specs=[row_spec(state_size)] + w_specs,
        out_specs=(row_spec(action_size), row_spec(1)),
        compiler_params=pltpu.CompilerParams(
            dimension_semantics=("parallel",)),
    )(x, *params)
    return pi[:batch], v[:batch]


# ----------------------------------------------------------------------------
# Parameter init (matches PyTorch nn.Linear default: U(+-1/sqrt(fan_in))),
# with optional zero-padding to hardware-friendly widths.
# ----------------------------------------------------------------------------
def _init_linear(key, fan_in, fan_out, pad_in=None, pad_out=None):
    pad_in = fan_in if pad_in is None else pad_in
    pad_out = fan_out if pad_out is None else pad_out
    kw, kb = jax.random.split(key)
    bound = 1.0 / float(fan_in) ** 0.5
    w = jax.random.uniform(kw, (fan_in, fan_out), jnp.float32, -bound, bound)
    b = jax.random.uniform(kb, (1, fan_out), jnp.float32, -bound, bound)
    w = jnp.pad(w, ((0, pad_in - fan_in), (0, pad_out - fan_out)))
    b = jnp.pad(b, ((0, 0), (0, pad_out - fan_out)))
    return w, b


class Net:
    """JAX/Pallas port of the PyTorch actor-critic Net."""

    def __init__(self, state_size, action_size, is_continuous=False, seed=0):
        self.is_continuous = is_continuous
        self.action_size = action_size
        key = jax.random.PRNGKey(seed)
        keys = jax.random.split(key, 8)

        # pi head: state -> 128 -> 64 -> 64 -> action_size (no padding needed).
        pi_dims = [(state_size, 128), (128, 64), (64, 64), (64, action_size)]
        self.pi_params = []
        for k, (fi, fo) in zip(keys[:4], pi_dims):
            w, b = _init_linear(k, fi, fo)
            self.pi_params += [w, b]

        # value head: state -> 50 -> 50 -> 50 -> 1, zero-padded 50 -> 64 so the
        # contractions use clean sublane tiles.  Math is identical (ReLU(0)=0).
        ve_dims = [(state_size, 50, state_size, 64),
                   (50, 50, 64, 64),
                   (50, 50, 64, 64),
                   (50, 1, 64, 1)]
        self.ve_params = []
        for k, (fi, fo, pi_, po) in zip(keys[4:], ve_dims):
            w, b = _init_linear(k, fi, fo, pi_, po)
            self.ve_params += [w, b]

    # Fused forward: one pallas_call computes both heads (launch-overhead bound
    # regime, so computing both even when only one is requested is ~free).
    def _forward_both(self, x, apply_softmax):
        x = jnp.asarray(x, dtype=jnp.float32)
        squeeze = x.ndim == 1
        if squeeze:
            x = x[None, :]
        params = tuple(self.pi_params) + tuple(self.ve_params)
        pi, v = _fused_forward(x, params, self.action_size, apply_softmax)
        if squeeze:
            pi, v = pi[0], v[0]
        return pi, v

    def getValue(self, x):
        _, v = self._forward_both(x, apply_softmax=False)
        return v

    def getPi(self, x):
        pi, _ = self._forward_both(x, apply_softmax=not self.is_continuous)
        return pi

    def setContinuous(self):
        self.is_continuous = True

    def forward(self, x):
        # The reference PyTorch module's forward is `pass`.
        # TODO(synk): original forward() is empty; no computation to port.
        return None


# ----------------------------------------------------------------------------
# Pure-JAX reference (uses the same stored/padded params) for validation.
# ----------------------------------------------------------------------------
def _reference_forward(x, pi_params, ve_params, apply_softmax):
    def mlp(h, params):
        for i in range(0, 8, 2):
            w, b = params[i], params[i + 1]
            h = h @ w + b
            if i < 6:
                h = jnp.maximum(h, 0.0)
        return h
    logits = mlp(x, pi_params)
    if apply_softmax:
        logits = jax.nn.softmax(logits, axis=-1)
    v = mlp(x, ve_params)
    return logits, v


if __name__ == "__main__":
    batch, state_size, action_size = 8, 16, 4
    key = jax.random.PRNGKey(0)
    kx, kbig = jax.random.split(key)
    x = jax.random.normal(kx, (batch, state_size), dtype=jnp.float32)

    net = Net(state_size, action_size, is_continuous=False, seed=0)

    # Small-batch path (single grid step).
    pi = net.getPi(x)        # softmax probabilities, [batch, action_size]
    v = net.getValue(x)      # state values, [batch, 1]
    jax.block_until_ready((pi, v))

    assert pi.shape == (batch, action_size)
    assert v.shape == (batch, 1)
    # softmax rows should sum to ~1 (approx reciprocal => loose tolerance)
    assert bool(jnp.allclose(jnp.sum(pi, axis=-1), 1.0, atol=2e-3))

    # Validate against a pure-JAX reference.
    ref_pi, ref_v = _reference_forward(
        x, net.pi_params, net.ve_params, apply_softmax=True)
    assert bool(jnp.allclose(pi, ref_pi, atol=2e-3))
    assert bool(jnp.allclose(v, ref_v, atol=1e-4, rtol=1e-4))

    # Larger batch exercises the batch grid (TB=512, 2 grid steps) + padding.
    xb = jax.random.normal(kbig, (520, state_size), dtype=jnp.float32)
    pib = net.getPi(xb)
    vb = net.getValue(xb)
    jax.block_until_ready((pib, vb))
    ref_pib, ref_vb = _reference_forward(
        xb, net.pi_params, net.ve_params, apply_softmax=True)
    assert pib.shape == (520, action_size) and vb.shape == (520, 1)
    assert bool(jnp.allclose(pib, ref_pib, atol=2e-3))
    assert bool(jnp.allclose(vb, ref_vb, atol=1e-4, rtol=1e-4))

    # continuous mode returns raw logits (no softmax)
    net.setContinuous()
    logits = net.getPi(x)
    jax.block_until_ready(logits)
    ref_logits, _ = _reference_forward(
        x, net.pi_params, net.ve_params, apply_softmax=False)
    assert logits.shape == (batch, action_size)
    assert bool(jnp.allclose(logits, ref_logits, atol=1e-4, rtol=1e-4))

    print("KERNEL_OK")
</pallas_src>

<mosaic_0001>
module attributes {stable_mosaic.version = 11 : i64} {
  func.func @_fused_net_kernel(%arg0: i32, %arg1: memref<8x16xf32, #tpu.memory_space<vmem>>, %arg2: memref<16x128xf32, #tpu.memory_space<vmem>>, %arg3: memref<1x128xf32, #tpu.memory_space<vmem>>, %arg4: memref<128x64xf32, #tpu.memory_space<vmem>>, %arg5: memref<1x64xf32, #tpu.memory_space<vmem>>, %arg6: memref<64x64xf32, #tpu.memory_space<vmem>>, %arg7: memref<1x64xf32, #tpu.memory_space<vmem>>, %arg8: memref<64x4xf32, #tpu.memory_space<vmem>>, %arg9: memref<1x4xf32, #tpu.memory_space<vmem>>, %arg10: memref<16x64xf32, #tpu.memory_space<vmem>>, %arg11: memref<1x64xf32, #tpu.memory_space<vmem>>, %arg12: memref<64x64xf32, #tpu.memory_space<vmem>>, %arg13: memref<1x64xf32, #tpu.memory_space<vmem>>, %arg14: memref<64x64xf32, #tpu.memory_space<vmem>>, %arg15: memref<1x64xf32, #tpu.memory_space<vmem>>, %arg16: memref<64x1xf32, #tpu.memory_space<vmem>>, %arg17: memref<1x1xf32, #tpu.memory_space<vmem>>, %arg18: memref<8x4xf32, #tpu.memory_space<vmem>>, %arg19: memref<8x1xf32, #tpu.memory_space<vmem>>) attributes {dimension_semantics = [#tpu.dimension_semantics<parallel>], iteration_bounds = array<i64: 1>, scalar_prefetch = 0 : i64, scratch_operands = 0 : i64, tpu.core_type = #tpu.core_type<tc>, window_params = [{transform_indices = @transform_0, window_bounds = array<i64: 8, 16>}, {pipeline_mode = #tpu.pipeline_mode<synchronous>, transform_indices = @transform_1, window_bounds = array<i64: 16, 128>}, {pipeline_mode = #tpu.pipeline_mode<synchronous>, transform_indices = @transform_2, window_bounds = array<i64: 1, 128>}, {pipeline_mode = #tpu.pipeline_mode<synchronous>, transform_indices = @transform_3, window_bounds = array<i64: 128, 64>}, {pipeline_mode = #tpu.pipeline_mode<synchronous>, transform_indices = @transform_4, window_bounds = array<i64: 1, 64>}, {pipeline_mode = #tpu.pipeline_mode<synchronous>, transform_indices = @transform_5, window_bounds = array<i64: 64, 64>}, {pipeline_mode = #tpu.pipeline_mode<synchronous>, transform_indices = @transform_6, window_bounds = array<i64: 1, 64>}, {pipeline_mode = #tpu.pipeline_mode<synchronous>, transform_indices = @transform_7, window_bounds = array<i64: 64, 4>}, {pipeline_mode = #tpu.pipeline_mode<synchronous>, transform_indices = @transform_8, window_bounds = array<i64: 1, 4>}, {pipeline_mode = #tpu.pipeline_mode<synchronous>, transform_indices = @transform_9, window_bounds = array<i64: 16, 64>}, {pipeline_mode = #tpu.pipeline_mode<synchronous>, transform_indices = @transform_10, window_bounds = array<i64: 1, 64>}, {pipeline_mode = #tpu.pipeline_mode<synchronous>, transform_indices = @transform_11, window_bounds = array<i64: 64, 64>}, {pipeline_mode = #tpu.pipeline_mode<synchronous>, transform_indices = @transform_12, window_bounds = array<i64: 1, 64>}, {pipeline_mode = #tpu.pipeline_mode<synchronous>, transform_indices = @transform_13, window_bounds = array<i64: 64, 64>}, {pipeline_mode = #tpu.pipeline_mode<synchronous>, transform_indices = @transform_14, window_bounds = array<i64: 1, 64>}, {pipeline_mode = #tpu.pipeline_mode<synchronous>, transform_indices = @transform_15, window_bounds = array<i64: 64, 1>}, {pipeline_mode = #tpu.pipeline_mode<synchronous>, transform_indices = @transform_16, window_bounds = array<i64: 1, 1>}, {transform_indices = @transform_17, window_bounds = array<i64: 8, 4>}, {transform_indices = @transform_18, window_bounds = array<i64: 8, 1>}]} {
    %c0 = arith.constant 0 : index
    %c0_0 = arith.constant 0 : index
    %0 = vector.load %arg1[%c0, %c0_0] : memref<8x16xf32, #tpu.memory_space<vmem>>, vector<8x16xf32>
    %c0_1 = arith.constant 0 : index
    %c0_2 = arith.constant 0 : index
    %1 = vector.load %arg2[%c0_1, %c0_2] : memref<16x128xf32, #tpu.memory_space<vmem>>, vector<16x128xf32>
    %cst = arith.constant dense<0.000000e+00> : vector<8x128xf32>
    %2 = tpu.matmul %0, %1, %cst {dimension_numbers = #tpu.dot_dimension_numbers<[1], [0], [0], [1], [0, 0, 1, 1], [], []>} : vector<8x16xf32>, vector<16x128xf32>, vector<8x128xf32> -> vector<8x128xf32>
    %c0_3 = arith.constant 0 : index
    %c0_4 = arith.constant 0 : index
    %3 = vector.load %arg3[%c0_3, %c0_4] : memref<1x128xf32, #tpu.memory_space<vmem>>, vector<1x128xf32>
    %4 = vector.broadcast %3 : vector<1x128xf32> to vector<8x128xf32>
    %5 = arith.addf %2, %4 : vector<8x128xf32>
    %cst_5 = arith.constant 0.000000e+00 : f32
    %6 = vector.broadcast %cst_5 : f32 to vector<8x128xf32>
    %7 = arith.maximumf %5, %6 : vector<8x128xf32>
    %c0_6 = arith.constant 0 : index
    %c0_7 = arith.constant 0 : index
    %8 = vector.load %arg4[%c0_6, %c0_7] : memref<128x64xf32, #tpu.memory_space<vmem>>, vector<128x64xf32>
    %cst_8 = arith.constant dense<0.000000e+00> : vector<8x64xf32>
    %9 = tpu.matmul %7, %8, %cst_8 {dimension_numbers = #tpu.dot_dimension_numbers<[1], [0], [0], [1], [0, 0, 1, 1], [], []>} : vector<8x128xf32>, vector<128x64xf32>, vector<8x64xf32> -> vector<8x64xf32>
    %c0_9 = arith.constant 0 : index
    %c0_10 = arith.constant 0 : index
    %10 = vector.load %arg5[%c0_9, %c0_10] : memref<1x64xf32, #tpu.memory_space<vmem>>, vector<1x64xf32>
    %11 = vector.broadcast %10 : vector<1x64xf32> to vector<8x64xf32>
    %12 = arith.addf %9, %11 : vector<8x64xf32>
    %cst_11 = arith.constant 0.000000e+00 : f32
    %13 = vector.broadcast %cst_11 : f32 to vector<8x64xf32>
    %14 = arith.maximumf %12, %13 : vector<8x64xf32>
    %c0_12 = arith.constant 0 : index
    %c0_13 = arith.constant 0 : index
    %15 = vector.load %arg6[%c0_12, %c0_13] : memref<64x64xf32, #tpu.memory_space<vmem>>, vector<64x64xf32>
    %cst_14 = arith.constant dense<0.000000e+00> : vector<8x64xf32>
    %16 = tpu.matmul %14, %15, %cst_14 {dimension_numbers = #tpu.dot_dimension_numbers<[1], [0], [0], [1], [0, 0, 1, 1], [], []>} : vector<8x64xf32>, vector<64x64xf32>, vector<8x64xf32> -> vector<8x64xf32>
    %c0_15 = arith.constant 0 : index
    %c0_16 = arith.constant 0 : index
    %17 = vector.load %arg7[%c0_15, %c0_16] : memref<1x64xf32, #tpu.memory_space<vmem>>, vector<1x64xf32>
    %18 = vector.broadcast %17 : vector<1x64xf32> to vector<8x64xf32>
    %19 = arith.addf %16, %18 : vector<8x64xf32>
    %cst_17 = arith.constant 0.000000e+00 : f32
    %20 = vector.broadcast %cst_17 : f32 to vector<8x64xf32>
    %21 = arith.maximumf %19, %20 : vector<8x64xf32>
    %c0_18 = arith.constant 0 : index
    %c0_19 = arith.constant 0 : index
    %22 = vector.load %arg8[%c0_18, %c0_19] : memref<64x4xf32, #tpu.memory_space<vmem>>, vector<64x4xf32>
    %cst_20 = arith.constant dense<0.000000e+00> : vector<8x4xf32>
    %23 = tpu.matmul %21, %22, %cst_20 {dimension_numbers = #tpu.dot_dimension_numbers<[1], [0], [0], [1], [0, 0, 1, 1], [], []>} : vector<8x64xf32>, vector<64x4xf32>, vector<8x4xf32> -> vector<8x4xf32>
    %c0_21 = arith.constant 0 : index
    %c0_22 = arith.constant 0 : index
    %24 = vector.load %arg9[%c0_21, %c0_22] : memref<1x4xf32, #tpu.memory_space<vmem>>, vector<1x4xf32>
    %25 = vector.broadcast %24 : vector<1x4xf32> to vector<8x4xf32>
    %26 = arith.addf %23, %25 : vector<8x4xf32>
    %cst_23 = arith.constant dense<0xFF800000> : vector<8xf32>
    %27 = vector.multi_reduction <maximumf>, %26, %cst_23 [1] : vector<8x4xf32> to vector<8xf32>
    %28 = vector.shape_cast %27 : vector<8xf32> to vector<8x1xf32>
    %29 = vector.broadcast %28 : vector<8x1xf32> to vector<8x4xf32>
    %30 = arith.subf %26, %29 : vector<8x4xf32>
    %31 = math.exp %30 : vector<8x4xf32>
    %cst_24 = arith.constant dense<0.000000e+00> : vector<8xf32>
    %32 = vector.multi_reduction <add>, %31, %cst_24 [1] : vector<8x4xf32> to vector<8xf32>
    %33 = vector.shape_cast %32 : vector<8xf32> to vector<8x1xf32>
    %34 = tpu.reciprocal %33 {approx = true} : vector<8x1xf32> -> vector<8x1xf32>
    %35 = vector.broadcast %34 : vector<8x1xf32> to vector<8x4xf32>
    %36 = arith.mulf %31, %35 : vector<8x4xf32>
    %c0_25 = arith.constant 0 : index
    %c0_26 = arith.constant 0 : index
    %37 = vector.load %arg18[%c0_25, %c0_26] : memref<8x4xf32, #tpu.memory_space<vmem>>, vector<8x4xf32>
    tpu.vector_store %arg18[%c0_25, %c0_26], %36 {strides = array<i32>} : memref<8x4xf32, #tpu.memory_space<vmem>>, vector<8x4xf32>,
    %c0_27 = arith.constant 0 : index
    %c0_28 = arith.constant 0 : index
    %38 = vector.load %arg10[%c0_27, %c0_28] : memref<16x64xf32, #tpu.memory_space<vmem>>, vector<16x64xf32>
    %cst_29 = arith.constant dense<0.000000e+00> : vector<8x64xf32>
    %39 = tpu.matmul %0, %38, %cst_29 {dimension_numbers = #tpu.dot_dimension_numbers<[1], [0], [0], [1], [0, 0, 1, 1], [], []>} : vector<8x16xf32>, vector<16x64xf32>, vector<8x64xf32> -> vector<8x64xf32>
    %c0_30 = arith.constant 0 : index
    %c0_31 = arith.constant 0 : index
    %40 = vector.load %arg11[%c0_30, %c0_31] : memref<1x64xf32, #tpu.memory_space<vmem>>, vector<1x64xf32>
    %41 = vector.broadcast %40 : vector<1x64xf32> to vector<8x64xf32>
    %42 = arith.addf %39, %41 : vector<8x64xf32>
    %cst_32 = arith.constant 0.000000e+00 : f32
    %43 = vector.broadcast %cst_32 : f32 to vector<8x64xf32>
    %44 = arith.maximumf %42, %43 : vector<8x64xf32>
    %c0_33 = arith.constant 0 : index
    %c0_34 = arith.constant 0 : index
    %45 = vector.load %arg12[%c0_33, %c0_34] : memref<64x64xf32, #tpu.memory_space<vmem>>, vector<64x64xf32>
    %cst_35 = arith.constant dense<0.000000e+00> : vector<8x64xf32>
    %46 = tpu.matmul %44, %45, %cst_35 {dimension_numbers = #tpu.dot_dimension_numbers<[1], [0], [0], [1], [0, 0, 1, 1], [], []>} : vector<8x64xf32>, vector<64x64xf32>, vector<8x64xf32> -> vector<8x64xf32>
    %c0_36 = arith.constant 0 : index
    %c0_37 = arith.constant 0 : index
    %47 = vector.load %arg13[%c0_36, %c0_37] : memref<1x64xf32, #tpu.memory_space<vmem>>, vector<1x64xf32>
    %48 = vector.broadcast %47 : vector<1x64xf32> to vector<8x64xf32>
    %49 = arith.addf %46, %48 : vector<8x64xf32>
    %cst_38 = arith.constant 0.000000e+00 : f32
    %50 = vector.broadcast %cst_38 : f32 to vector<8x64xf32>
    %51 = arith.maximumf %49, %50 : vector<8x64xf32>
    %c0_39 = arith.constant 0 : index
    %c0_40 = arith.constant 0 : index
    %52 = vector.load %arg14[%c0_39, %c0_40] : memref<64x64xf32, #tpu.memory_space<vmem>>, vector<64x64xf32>
    %cst_41 = arith.constant dense<0.000000e+00> : vector<8x64xf32>
    %53 = tpu.matmul %51, %52, %cst_41 {dimension_numbers = #tpu.dot_dimension_numbers<[1], [0], [0], [1], [0, 0, 1, 1], [], []>} : vector<8x64xf32>, vector<64x64xf32>, vector<8x64xf32> -> vector<8x64xf32>
    %c0_42 = arith.constant 0 : index
    %c0_43 = arith.constant 0 : index
    %54 = vector.load %arg15[%c0_42, %c0_43] : memref<1x64xf32, #tpu.memory_space<vmem>>, vector<1x64xf32>
    %55 = vector.broadcast %54 : vector<1x64xf32> to vector<8x64xf32>
    %56 = arith.addf %53, %55 : vector<8x64xf32>
    %cst_44 = arith.constant 0.000000e+00 : f32
    %57 = vector.broadcast %cst_44 : f32 to vector<8x64xf32>
    %58 = arith.maximumf %56, %57 : vector<8x64xf32>
    %c0_45 = arith.constant 0 : index
    %c0_46 = arith.constant 0 : index
    %59 = vector.load %arg16[%c0_45, %c0_46] : memref<64x1xf32, #tpu.memory_space<vmem>>, vector<64x1xf32>
    %cst_47 = arith.constant dense<0.000000e+00> : vector<8x1xf32>
    %60 = tpu.matmul %58, %59, %cst_47 {dimension_numbers = #tpu.dot_dimension_numbers<[1], [0], [0], [1], [0, 0, 1, 1], [], []>} : vector<8x64xf32>, vector<64x1xf32>, vector<8x1xf32> -> vector<8x1xf32>
    %c0_48 = arith.constant 0 : index
    %c0_49 = arith.constant 0 : index
    %61 = vector.load %arg17[%c0_48, %c0_49] : memref<1x1xf32, #tpu.memory_space<vmem>>, vector<1x1xf32>
    %62 = vector.broadcast %61 : vector<1x1xf32> to vector<8x1xf32>
    %63 = arith.addf %60, %62 : vector<8x1xf32>
    %c0_50 = arith.constant 0 : index
    %c0_51 = arith.constant 0 : index
    %64 = vector.load %arg19[%c0_50, %c0_51] : memref<8x1xf32, #tpu.memory_space<vmem>>, vector<8x1xf32>
    tpu.vector_store %arg19[%c0_50, %c0_51], %63 {strides = array<i32>} : memref<8x1xf32, #tpu.memory_space<vmem>>, vector<8x1xf32>,
    return
  }
  func.func @transform_0(%arg0: i32) -> (i32, i32) {
    %c0_i32 = arith.constant 0 : i32
    %c0_i32_0 = arith.constant 0 : i32
    return %arg0, %c0_i32 : i32, i32
  }
  func.func @transform_1(%arg0: i32) -> (i32, i32) {
    %c0_i32 = arith.constant 0 : i32
    %c0_i32_0 = arith.constant 0 : i32
    %c0_i32_1 = arith.constant 0 : i32
    return %c0_i32, %c0_i32_0 : i32, i32
  }
  func.func @transform_2(%arg0: i32) -> (i32, i32) {
    %c0_i32 = arith.constant 0 : i32
    %c0_i32_0 = arith.constant 0 : i32
    %c0_i32_1 = arith.constant 0 : i32
    return %c0_i32, %c0_i32_0 : i32, i32
  }
  func.func @transform_3(%arg0: i32) -> (i32, i32) {
    %c0_i32 = arith.constant 0 : i32
    %c0_i32_0 = arith.constant 0 : i32
    %c0_i32_1 = arith.constant 0 : i32
    return %c0_i32, %c0_i32_0 : i32, i32
  }
  func.func @transform_4(%arg0: i32) -> (i32, i32) {
    %c0_i32 = arith.constant 0 : i32
    %c0_i32_0 = arith.constant 0 : i32
    %c0_i32_1 = arith.constant 0 : i32
    return %c0_i32, %c0_i32_0 : i32, i32
  }
  func.func @transform_5(%arg0: i32) -> (i32, i32) {
    %c0_i32 = arith.constant 0 : i32
    %c0_i32_0 = arith.constant 0 : i32
    %c0_i32_1 = arith.constant 0 : i32
    return %c0_i32, %c0_i32_0 : i32, i32
  }
  func.func @transform_6(%arg0: i32) -> (i32, i32) {
    %c0_i32 = arith.constant 0 : i32
    %c0_i32_0 = arith.constant 0 : i32
    %c0_i32_1 = arith.constant 0 : i32
    return %c0_i32, %c0_i32_0 : i32, i32
  }
  func.func @transform_7(%arg0: i32) -> (i32, i32) {
    %c0_i32 = arith.constant 0 : i32
    %c0_i32_0 = arith.constant 0 : i32
    %c0_i32_1 = arith.constant 0 : i32
    return %c0_i32, %c0_i32_0 : i32, i32
  }
  func.func @transform_8(%arg0: i32) -> (i32, i32) {
    %c0_i32 = arith.constant 0 : i32
    %c0_i32_0 = arith.constant 0 : i32
    %c0_i32_1 = arith.constant 0 : i32
    return %c0_i32, %c0_i32_0 : i32, i32
  }
  func.func @transform_9(%arg0: i32) -> (i32, i32) {
    %c0_i32 = arith.constant 0 : i32
    %c0_i32_0 = arith.constant 0 : i32
    %c0_i32_1 = arith.constant 0 : i32
    return %c0_i32, %c0_i32_0 : i32, i32
  }
  func.func @transform_10(%arg0: i32) -> (i32, i32) {
    %c0_i32 = arith.constant 0 : i32
    %c0_i32_0 = arith.constant 0 : i32
    %c0_i32_1 = arith.constant 0 : i32
    return %c0_i32, %c0_i32_0 : i32, i32
  }
  func.func @transform_11(%arg0: i32) -> (i32, i32) {
    %c0_i32 = arith.constant 0 : i32
    %c0_i32_0 = arith.constant 0 : i32
    %c0_i32_1 = arith.constant 0 : i32
    return %c0_i32, %c0_i32_0 : i32, i32
  }
  func.func @transform_12(%arg0: i32) -> (i32, i32) {
    %c0_i32 = arith.constant 0 : i32
    %c0_i32_0 = arith.constant 0 : i32
    %c0_i32_1 = arith.constant 0 : i32
    return %c0_i32, %c0_i32_0 : i32, i32
  }
  func.func @transform_13(%arg0: i32) -> (i32, i32) {
    %c0_i32 = arith.constant 0 : i32
    %c0_i32_0 = arith.constant 0 : i32
    %c0_i32_1 = arith.constant 0 : i32
    return %c0_i32, %c0_i32_0 : i32, i32
  }
  func.func @transform_14(%arg0: i32) -> (i32, i32) {
    %c0_i32 = arith.constant 0 : i32
    %c0_i32_0 = arith.constant 0 : i32
    %c0_i32_1 = arith.constant 0 : i32
    return %c0_i32, %c0_i32_0 : i32, i32
  }
  func.func @transform_15(%arg0: i32) -> (i32, i32) {
    %c0_i32 = arith.constant 0 : i32
    %c0_i32_0 = arith.constant 0 : i32
    %c0_i32_1 = arith.constant 0 : i32
    return %c0_i32, %c0_i32_0 : i32, i32
  }
  func.func @transform_16(%arg0: i32) -> (i32, i32) {
    %c0_i32 = arith.constant 0 : i32
    %c0_i32_0 = arith.constant 0 : i32
    %c0_i32_1 = arith.constant 0 : i32
    return %c0_i32, %c0_i32_0 : i32, i32
  }
  func.func @transform_17(%arg0: i32) -> (i32, i32) {
    %c0_i32 = arith.constant 0 : i32
    %c0_i32_0 = arith.constant 0 : i32
    return %arg0, %c0_i32 : i32, i32
  }
  func.func @transform_18(%arg0: i32) -> (i32, i32) {
    %c0_i32 = arith.constant 0 : i32
    %c0_i32_0 = arith.constant 0 : i32
    return %arg0, %c0_i32 : i32, i32
  }
}

</mosaic_0001>

<llo_original>
// kernel: _fused_forward.1
$region0: #{_fused_forward.1}
  #allocation0 [shape = 'u32[]', space=smem, size = 0x4, offset = 0x4, fixed_abs, tag = 'smem constant byte address 0x4 - core index']
  #allocation1 [shape = 'u32[144,128]{1,0:T(1,128)}', space=vmem, size = 0x12000, scoped, tag = 'internal scratch']
  #allocation2 [shape = 'f32[1,1]{1,0:T(1,128)S(1)}', space=vmem, size = 0x200, scoped, tag = 'scoped memory for _fused_forward.1']
  %s0 = inlined_call_operand.vmem [shape: f32[8,16], index: 0, kind: input, shape index: {}]
  %s1 = inlined_call_operand.vmem [shape: f32[16,128], index: 1, kind: input, shape index: {}]
  %s2 = inlined_call_operand.vmem [shape: f32[1,128], index: 2, kind: input, shape index: {}]
  %s3 = inlined_call_operand.vmem [shape: f32[128,64], index: 3, kind: input, shape index: {}]
  %s4 = inlined_call_operand.vmem [shape: f32[1,64], index: 4, kind: input, shape index: {}]
  %s5 = inlined_call_operand.vmem [shape: f32[64,64], index: 5, kind: input, shape index: {}]
  %s6 = inlined_call_operand.vmem [shape: f32[1,64], index: 6, kind: input, shape index: {}]
  %s7 = inlined_call_operand.vmem [shape: f32[64,4], index: 7, kind: input, shape index: {}]
  %s8 = inlined_call_operand.vmem [shape: f32[1,4], index: 8, kind: input, shape index: {}]
  %s9 = inlined_call_operand.vmem [shape: f32[16,64], index: 9, kind: input, shape index: {}]
  %s10 = inlined_call_operand.vmem [shape: f32[1,64], index: 10, kind: input, shape index: {}]
  %s11 = inlined_call_operand.vmem [shape: f32[64,64], index: 11, kind: input, shape index: {}]
  %s12 = inlined_call_operand.vmem [shape: f32[1,64], index: 12, kind: input, shape index: {}]
  %s13 = inlined_call_operand.vmem [shape: f32[64,64], index: 13, kind: input, shape index: {}]
  %s14 = inlined_call_operand.vmem [shape: f32[1,64], index: 14, kind: input, shape index: {}]
  %s15 = inlined_call_operand.vmem [shape: f32[64,1], index: 15, kind: input, shape index: {}]
  %s16 = inlined_call_operand.<no memory space> [shape: f32[1,1], index: 16, kind: input, shape index: {}]
  %s17 = inlined_call_operand.vmem [shape: f32[8,4], index: 17, kind: output, shape index: {0}]
  %s18 = inlined_call_operand.vmem [shape: f32[8,1], index: 18, kind: output, shape index: {1}]
  %19 = xla_tuple %s17, %s18
  %s20 = sld [smem:[#allocation0]]
  $region86: #{_fused_forward.1} parent=0
    _
  %s22 = ssub.s32 1, %s20
  %s23 = scalar_select 0, %s22, %s20
  %v24 = vstv %s16
  %25 = vst [vmem:[#allocation2] sm:$0x1] %v24
  // Predicated region
  $region2: #{_fused_forward.1} parent=0 // pred_check
    _
  $region3: #{_fused_forward.1} parent=0 // pred_check_branch
    %27 = sbr.rel (0) target = $region5
  $region4: #{_fused_forward.1} parent=0 // pred_region
    _
  $region5: #{_fused_forward.1} parent=0 // pred_fallthru
    _
  // Predicated region
  $region6: #{_fused_forward.1} parent=0 // pred_check
    _
  $region7: #{_fused_forward.1} parent=0 // pred_check_branch
    %29 = sbr.rel (0) target = $region9
  $region8: #{_fused_forward.1} parent=0 // pred_region
    _
  $region9: #{_fused_forward.1} parent=0 // pred_fallthru
    _
  // Predicated region
  $region10: #{_fused_forward.1} parent=0 // pred_check
    _
  $region11: #{_fused_forward.1} parent=0 // pred_check_branch
    %31 = sbr.rel (0) target = $region13
  $region12: #{_fused_forward.1} parent=0 // pred_region
    _
  $region13: #{_fused_forward.1} parent=0 // pred_fallthru
    _
  // Predicated region
  $region14: #{_fused_forward.1} parent=0 // pred_check
    _
  $region15: #{_fused_forward.1} parent=0 // pred_check_branch
    %33 = sbr.rel (0) target = $region17
  $region16: #{_fused_forward.1} parent=0 // pred_region
    _
  $region17: #{_fused_forward.1} parent=0 // pred_fallthru
    _
  // Predicated region
  $region18: #{_fused_forward.1} parent=0 // pred_check
    _
  $region19: #{_fused_forward.1} parent=0 // pred_check_branch
    %35 = sbr.rel (0) target = $region21
  $region20: #{_fused_forward.1} parent=0 // pred_region
    _
  $region21: #{_fused_forward.1} parent=0 // pred_fallthru
    _
  // Predicated region
  $region22: #{_fused_forward.1} parent=0 // pred_check
    _
  $region23: #{_fused_forward.1} parent=0 // pred_check_branch
    %37 = sbr.rel (0) target = $region25
  $region24: #{_fused_forward.1} parent=0 // pred_region
    _
  $region25: #{_fused_forward.1} parent=0 // pred_fallthru
    _
  // Predicated region
  $region26: #{_fused_forward.1} parent=0 // pred_check
    _
  $region27: #{_fused_forward.1} parent=0 // pred_check_branch
    %39 = sbr.rel (0) target = $region29
  $region28: #{_fused_forward.1} parent=0 // pred_region
    _
  $region29: #{_fused_forward.1} parent=0 // pred_fallthru
    _
  // Predicated region
  $region30: #{_fused_forward.1} parent=0 // pred_check
    _
  $region31: #{_fused_forward.1} parent=0 // pred_check_branch
    %41 = sbr.rel (0) target = $region33
  $region32: #{_fused_forward.1} parent=0 // pred_region
    _
  $region33: #{_fused_forward.1} parent=0 // pred_fallthru
    _
  // Predicated region
  $region34: #{_fused_forward.1} parent=0 // pred_check
    _
  $region35: #{_fused_forward.1} parent=0 // pred_check_branch
    %43 = sbr.rel (0) target = $region37
  $region36: #{_fused_forward.1} parent=0 // pred_region
    _
  $region37: #{_fused_forward.1} parent=0 // pred_fallthru
    _
  // Predicated region
  $region38: #{_fused_forward.1} parent=0 // pred_check
    _
  $region39: #{_fused_forward.1} parent=0 // pred_check_branch
    %45 = sbr.rel (0) target = $region41
  $region40: #{_fused_forward.1} parent=0 // pred_region
    _
  $region41: #{_fused_forward.1} parent=0 // pred_fallthru
    _
  // Predicated region
  $region42: #{_fused_forward.1} parent=0 // pred_check
    _
  $region43: #{_fused_forward.1} parent=0 // pred_check_branch
    %47 = sbr.rel (0) target = $region45
  $region44: #{_fused_forward.1} parent=0 // pred_region
    _
  $region45: #{_fused_forward.1} parent=0 // pred_fallthru
    _
  // Predicated region
  $region46: #{_fused_forward.1} parent=0 // pred_check
    _
  $region47: #{_fused_forward.1} parent=0 // pred_check_branch
    %49 = sbr.rel (0) target = $region49
  $region48: #{_fused_forward.1} parent=0 // pred_region
    _
  $region49: #{_fused_forward.1} parent=0 // pred_fallthru
    _
  // Predicated region
  $region50: #{_fused_forward.1} parent=0 // pred_check
    _
  $region51: #{_fused_forward.1} parent=0 // pred_check_branch
    %51 = sbr.rel (0) target = $region53
  $region52: #{_fused_forward.1} parent=0 // pred_region
    _
  $region53: #{_fused_forward.1} parent=0 // pred_fallthru
    _
  // Predicated region
  $region54: #{_fused_forward.1} parent=0 // pred_check
    _
  $region55: #{_fused_forward.1} parent=0 // pred_check_branch
    %53 = sbr.rel (0) target = $region57
  $region56: #{_fused_forward.1} parent=0 // pred_region
    _
  $region57: #{_fused_forward.1} parent=0 // pred_fallthru
    _
  // Predicated region
  $region58: #{_fused_forward.1} parent=0 // pred_check
    _
  $region59: #{_fused_forward.1} parent=0 // pred_check_branch
    %55 = sbr.rel (0) target = $region61
  $region60: #{_fused_forward.1} parent=0 // pred_region
    _
  $region61: #{_fused_forward.1} parent=0 // pred_fallthru
    _
  // Predicated region
  $region62: #{_fused_forward.1} parent=0 // pred_check
    _
  $region63: #{_fused_forward.1} parent=0 // pred_check_branch
    %57 = sbr.rel (0) target = $region65
  $region64: #{_fused_forward.1} parent=0 // pred_region
    _
  $region65: #{_fused_forward.1} parent=0 // pred_fallthru
    _
  // Predicated region
  $region66: #{_fused_forward.1} parent=0 // pred_check
    _
  $region67: #{_fused_forward.1} parent=0 // pred_check_branch
    %59 = sbr.rel (0) target = $region69
  $region68: #{_fused_forward.1} parent=0 // pred_region
    _
  $region69: #{_fused_forward.1} parent=0 // pred_fallthru
    _
  %v60 = vld [vmem:[%s0] sm:$0xff]
  %v61 = vld [vmem:[%s1] sm:$0xff]
  %v62 = vld [vmem:[%s1 + $0x8] sm:$0xff]
  %v63 = vld [vmem:[%s2] sm:$0x1]
  %v65 = vlaneseq
  %v66 = vshrl.u32 %v65, 7
  %v67 = vsub.s32 0, %v66
  %v68 = vrot.slane %v63, %v67
  %vm70 = vcmask 130048
  %v72 = vsel %vm70, %v60, 0
  %74 = vmatprep.subr.mxu0 0.0
  %75 = vmatpush1.msra.mxu0 0.0
  %76 = vmatprep.subr.mxu0 0.0
  %77 = vmatpush1.msra.mxu0 0.0
  %78 = vmatprep.subr.mxu0 0.0
  %79 = vmatpush1.msra.mxu0 0.0
  %80 = vmatprep.subr.mxu0 0.0
  %81 = vmatpush1.msra.mxu0 0.0
  %82 = vmatprep.subr.mxu0 0.0
  %83 = vmatpush1.msra.mxu0 0.0
  %84 = vmatprep.subr.mxu0 0.0
  %85 = vmatpush1.msra.mxu0 0.0
  %86 = vmatprep.subr.mxu0 0.0
  %87 = vmatpush1.msra.mxu0 0.0
  %88 = vmatprep.subr.mxu0 0.0
  %89 = vmatpush1.msra.mxu0 0.0
  %90 = vmatprep.subr.mxu0 0.0
  %91 = vmatpush1.msra.mxu0 0.0
  %92 = vmatprep.subr.mxu0 0.0
  %93 = vmatpush1.msra.mxu0 0.0
  %94 = vmatprep.subr.mxu0 0.0
  %95 = vmatpush1.msra.mxu0 0.0
  %96 = vmatprep.subr.mxu0 0.0
  %97 = vmatpush1.msra.mxu0 0.0
  %98 = vmatprep.subr.mxu0 0.0
  %99 = vmatpush1.msra.mxu0 0.0
  %100 = vmatprep.subr.mxu0 0.0
  %101 = vmatpush1.msra.mxu0 0.0
  %102 = vmatprep.subr.mxu0 0.0
  %103 = vmatpush1.msra.mxu0 %v62
  %104 = vmatprep.subr.mxu0 0.0
  %105 = vmatpush1.msra.mxu0 %v61
  %106 = vmatprep.subr.mxu0 0.0
  %107 = vmatpush2.msra.mxu0 0.0
  %108 = vmatprep.subr.mxu0 0.0
  %109 = vmatpush2.msra.mxu0 0.0
  %110 = vmatprep.subr.mxu0 0.0
  %111 = vmatpush2.msra.mxu0 0.0
  %112 = vmatprep.subr.mxu0 0.0
  %113 = vmatpush2.msra.mxu0 0.0
  %114 = vmatprep.subr.mxu0 0.0
  %115 = vmatpush2.msra.mxu0 0.0
  %116 = vmatprep.subr.mxu0 0.0
  %117 = vmatpush2.msra.mxu0 0.0
  %118 = vmatprep.subr.mxu0 0.0
  %119 = vmatpush2.msra.mxu0 0.0
  %120 = vmatprep.subr.mxu0 0.0
  %121 = vmatpush2.msra.mxu0 0.0
  %122 = vmatprep.subr.mxu0 0.0
  %123 = vmatpush2.msra.mxu0 0.0
  %124 = vmatprep.subr.mxu0 0.0
  %125 = vmatpush2.msra.mxu0 0.0
  %126 = vmatprep.subr.mxu0 0.0
  %127 = vmatpush2.msra.mxu0 0.0
  %128 = vmatprep.subr.mxu0 0.0
  %129 = vmatpush2.msra.mxu0 0.0
  %130 = vmatprep.subr.mxu0 0.0
  %131 = vmatpush2.msra.mxu0 0.0
  %132 = vmatprep.subr.mxu0 0.0
  %133 = vmatpush2.msra.mxu0 0.0
  %134 = vmatprep.subr.mxu0 0.0
  %135 = vmatpush2.msra.mxu0 0.0
  %136 = vmatprep.subr.mxu0 0.0
  %137 = vmatpush2.msra.mxu0 0.0
  %138 = vmatprep.mubr.f32.mxu0 0.0
  %139 = vmatmul.mubr.f32.gmra.mxu0 %v72
  %v140 = vpop.f32.mrf.mxu0
  %v141 = vadd.f32 %v68, %v140
  %v142 = vpop.f32.mrf.mxu0
  %143 = vdwg.mxu0
  %v144 = vmax.f32 %v141, 0.0
  %v145 = vld [vmem:[%s3] sm:$0xff]
  %v146 = vld [vmem:[%s3 + $0x8] sm:$0xff]
  %v147 = vld [vmem:[%s3 + $0x10] sm:$0xff]
  %v148 = vld [vmem:[%s3 + $0x18] sm:$0xff]
  %v149 = vld [vmem:[%s3 + $0x20] sm:$0xff]
  %v150 = vld [vmem:[%s3 + $0x28] sm:$0xff]
  %v151 = vld [vmem:[%s3 + $0x30] sm:$0xff]
  %v152 = vld [vmem:[%s3 + $0x38] sm:$0xff]
  %v153 = vld [vmem:[%s3 + $0x40] sm:$0xff]
  %v154 = vld [vmem:[%s3 + $0x48] sm:$0xff]
  %v155 = vld [vmem:[%s3 + $0x50] sm:$0xff]
  %v156 = vld [vmem:[%s3 + $0x58] sm:$0xff]
  %v157 = vld [vmem:[%s3 + $0x60] sm:$0xff]
  %v158 = vld [vmem:[%s3 + $0x68] sm:$0xff]
  %v159 = vld [vmem:[%s3 + $0x70] sm:$0xff]
  %v160 = vld [vmem:[%s3 + $0x78] sm:$0xff]
  %v161 = vld [vmem:[%s4] sm:$0x1]
  %v163 = vlaneseq
  %v164 = vshrl.u32 %v163, 7
  %v165 = vsub.s32 0, %v164
  %v166 = vrot.slane %v161, %v165
  %168 = vmatprep.subr.mxu0 0.0
  %169 = vmatpush1.msra.mxu0 %v160
  %170 = vmatprep.subr.mxu0 0.0
  %171 = vmatpush1.msra.mxu0 %v159
  %172 = vmatprep.subr.mxu0 0.0
  %173 = vmatpush1.msra.mxu0 %v158
  %174 = vmatprep.subr.mxu0 0.0
  %175 = vmatpush1.msra.mxu0 %v157
  %176 = vmatprep.subr.mxu0 0.0
  %177 = vmatpush1.msra.mxu0 %v156
  %178 = vmatprep.subr.mxu0 0.0
  %179 = vmatpush1.msra.mxu0 %v155
  %180 = vmatprep.subr.mxu0 0.0
  %181 = vmatpush1.msra.mxu0 %v154
  %182 = vmatprep.subr.mxu0 0.0
  %183 = vmatpush1.msra.mxu0 %v153
  %184 = vmatprep.subr.mxu0 0.0
  %185 = vmatpush1.msra.mxu0 %v152
  %186 = vmatprep.subr.mxu0 0.0
  %187 = vmatpush1.msra.mxu0 %v151
  %188 = vmatprep.subr.mxu0 0.0
  %189 = vmatpush1.msra.mxu0 %v150
  %190 = vmatprep.subr.mxu0 0.0
  %191 = vmatpush1.msra.mxu0 %v149
  %192 = vmatprep.subr.mxu0 0.0
  %193 = vmatpush1.msra.mxu0 %v148
  %194 = vmatprep.subr.mxu0 0.0
  %195 = vmatpush1.msra.mxu0 %v147
  %196 = vmatprep.subr.mxu0 0.0
  %197 = vmatpush1.msra.mxu0 %v146
  %198 = vmatprep.subr.mxu0 0.0
  %199 = vmatpush1.msra.mxu0 %v145
  %200 = vmatprep.subr.mxu0 0.0
  %201 = vmatpush2.msra.mxu0 0.0
  %202 = vmatprep.subr.mxu0 0.0
  %203 = vmatpush2.msra.mxu0 0.0
  %204 = vmatprep.subr.mxu0 0.0
  %205 = vmatpush2.msra.mxu0 0.0
  %206 = vmatprep.subr.mxu0 0.0
  %207 = vmatpush2.msra.mxu0 0.0
  %208 = vmatprep.subr.mxu0 0.0
  %209 = vmatpush2.msra.mxu0 0.0
  %210 = vmatprep.subr.mxu0 0.0
  %211 = vmatpush2.msra.mxu0 0.0
  %212 = vmatprep.subr.mxu0 0.0
  %213 = vmatpush2.msra.mxu0 0.0
  %214 = vmatprep.subr.mxu0 0.0
  %215 = vmatpush2.msra.mxu0 0.0
  %216 = vmatprep.subr.mxu0 0.0
  %217 = vmatpush2.msra.mxu0 0.0
  %218 = vmatprep.subr.mxu0 0.0
  %219 = vmatpush2.msra.mxu0 0.0
  %220 = vmatprep.subr.mxu0 0.0
  %221 = vmatpush2.msra.mxu0 0.0
  %222 = vmatprep.subr.mxu0 0.0
  %223 = vmatpush2.msra.mxu0 0.0
  %224 = vmatprep.subr.mxu0 0.0
  %225 = vmatpush2.msra.mxu0 0.0
  %226 = vmatprep.subr.mxu0 0.0
  %227 = vmatpush2.msra.mxu0 0.0
  %228 = vmatprep.subr.mxu0 0.0
  %229 = vmatpush2.msra.mxu0 0.0
  %230 = vmatprep.subr.mxu0 0.0
  %231 = vmatpush2.msra.mxu0 0.0
  %232 = vmatprep.mubr.f32.mxu0 0.0
  %233 = vmatmul.mubr.f32.gmra.mxu0 %v144
  %v234 = vpop.f32.mrf.mxu0
  %v235 = vadd.f32 %v166, %v234
  %v236 = vpop.f32.mrf.mxu0
  %237 = vdwg.mxu0
  %v238 = vmax.f32 %v235, 0.0
  %v239 = vld [vmem:[%s5] sm:$0xff]
  %v240 = vld [vmem:[%s5 + $0x8] sm:$0xff]
  %v241 = vld [vmem:[%s5 + $0x10] sm:$0xff]
  %v242 = vld [vmem:[%s5 + $0x18] sm:$0xff]
  %v243 = vld [vmem:[%s5 + $0x20] sm:$0xff]
  %v244 = vld [vmem:[%s5 + $0x28] sm:$0xff]
  %v245 = vld [vmem:[%s5 + $0x30] sm:$0xff]
  %v246 = vld [vmem:[%s5 + $0x38] sm:$0xff]
  %v247 = vld [vmem:[%s6] sm:$0x1]
  %v249 = vlaneseq
  %v250 = vshrl.u32 %v249, 7
  %v251 = vsub.s32 0, %v250
  %v252 = vrot.slane %v247, %v251
  %vm254 = vcmask 523264
  %v256 = vsel %vm254, %v238, 0
  %258 = vmatprep.subr.mxu0 0.0
  %259 = vmatpush1.msra.mxu0 0.0
  %260 = vmatprep.subr.mxu0 0.0
  %261 = vmatpush1.msra.mxu0 0.0
  %262 = vmatprep.subr.mxu0 0.0
  %263 = vmatpush1.msra.mxu0 0.0
  %264 = vmatprep.subr.mxu0 0.0
  %265 = vmatpush1.msra.mxu0 0.0
  %266 = vmatprep.subr.mxu0 0.0
  %267 = vmatpush1.msra.mxu0 0.0
  %268 = vmatprep.subr.mxu0 0.0
  %269 = vmatpush1.msra.mxu0 0.0
  %270 = vmatprep.subr.mxu0 0.0
  %271 = vmatpush1.msra.mxu0 0.0
  %272 = vmatprep.subr.mxu0 0.0
  %273 = vmatpush1.msra.mxu0 0.0
  %274 = vmatprep.subr.mxu0 0.0
  %275 = vmatpush1.msra.mxu0 %v246
  %276 = vmatprep.subr.mxu0 0.0
  %277 = vmatpush1.msra.mxu0 %v245
  %278 = vmatprep.subr.mxu0 0.0
  %279 = vmatpush1.msra.mxu0 %v244
  %280 = vmatprep.subr.mxu0 0.0
  %281 = vmatpush1.msra.mxu0 %v243
  %282 = vmatprep.subr.mxu0 0.0
  %283 = vmatpush1.msra.mxu0 %v242
  %284 = vmatprep.subr.mxu0 0.0
  %285 = vmatpush1.msra.mxu0 %v241
  %286 = vmatprep.subr.mxu0 0.0
  %287 = vmatpush1.msra.mxu0 %v240
  %288 = vmatprep.subr.mxu0 0.0
  %289 = vmatpush1.msra.mxu0 %v239
  %290 = vmatprep.subr.mxu0 0.0
  %291 = vmatpush2.msra.mxu0 0.0
  %292 = vmatprep.subr.mxu0 0.0
  %293 = vmatpush2.msra.mxu0 0.0
  %294 = vmatprep.subr.mxu0 0.0
  %295 = vmatpush2.msra.mxu0 0.0
  %296 = vmatprep.subr.mxu0 0.0
  %297 = vmatpush2.msra.mxu0 0.0
  %298 = vmatprep.subr.mxu0 0.0
  %299 = vmatpush2.msra.mxu0 0.0
  %300 = vmatprep.subr.mxu0 0.0
  %301 = vmatpush2.msra.mxu0 0.0
  %302 = vmatprep.subr.mxu0 0.0
  %303 = vmatpush2.msra.mxu0 0.0
  %304 = vmatprep.subr.mxu0 0.0
  %305 = vmatpush2.msra.mxu0 0.0
  %306 = vmatprep.subr.mxu0 0.0
  %307 = vmatpush2.msra.mxu0 0.0
  %308 = vmatprep.subr.mxu0 0.0
  %309 = vmatpush2.msra.mxu0 0.0
  %310 = vmatprep.subr.mxu0 0.0
  %311 = vmatpush2.msra.mxu0 0.0
  %312 = vmatprep.subr.mxu0 0.0
  %313 = vmatpush2.msra.mxu0 0.0
  %314 = vmatprep.subr.mxu0 0.0
  %315 = vmatpush2.msra.mxu0 0.0
  %316 = vmatprep.subr.mxu0 0.0
  %317 = vmatpush2.msra.mxu0 0.0
  %318 = vmatprep.subr.mxu0 0.0
  %319 = vmatpush2.msra.mxu0 0.0
  %320 = vmatprep.subr.mxu0 0.0
  %321 = vmatpush2.msra.mxu0 0.0
  %322 = vmatprep.mubr.f32.mxu0 0.0
  %323 = vmatmul.mubr.f32.gmra.mxu0 %v256
  %v324 = vpop.f32.mrf.mxu0
  %v325 = vadd.f32 %v252, %v324
  %v326 = vpop.f32.mrf.mxu0
  %327 = vdwg.mxu0
  %v328 = vmax.f32 %v325, 0.0
  %v329 = vld [vmem:[%s7] sm:$0xff]
  %v330 = vld [vmem:[%s7 + $0x8] sm:$0xff]
  %v331 = vld [vmem:[%s7 + $0x10] sm:$0xff]
  %v332 = vld [vmem:[%s7 + $0x18] sm:$0xff]
  %v333 = vld [vmem:[%s7 + $0x20] sm:$0xff]
  %v334 = vld [vmem:[%s7 + $0x28] sm:$0xff]
  %v335 = vld [vmem:[%s7 + $0x30] sm:$0xff]
  %v336 = vld [vmem:[%s7 + $0x38] sm:$0xff]
  %v337 = vld [vmem:[%s8] sm:$0x1]
  %v339 = vlaneseq
  %v340 = vshrl.u32 %v339, 7
  %v341 = vsub.s32 0, %v340
  %v342 = vrot.slane %v337, %v341
  %v345 = vsel %vm254, %v328, 0
  %347 = vmatprep.subr.mxu0 0.0
  %348 = vmatpush1.msra.mxu0 0.0
  %349 = vmatprep.subr.mxu0 0.0
  %350 = vmatpush1.msra.mxu0 0.0
  %351 = vmatprep.subr.mxu0 0.0
  %352 = vmatpush1.msra.mxu0 0.0
  %353 = vmatprep.subr.mxu0 0.0
  %354 = vmatpush1.msra.mxu0 0.0
  %355 = vmatprep.subr.mxu0 0.0
  %356 = vmatpush1.msra.mxu0 0.0
  %357 = vmatprep.subr.mxu0 0.0
  %358 = vmatpush1.msra.mxu0 0.0
  %359 = vmatprep.subr.mxu0 0.0
  %360 = vmatpush1.msra.mxu0 0.0
  %361 = vmatprep.subr.mxu0 0.0
  %362 = vmatpush1.msra.mxu0 0.0
  %363 = vmatprep.subr.mxu0 0.0
  %364 = vmatpush1.msra.mxu0 %v336
  %365 = vmatprep.subr.mxu0 0.0
  %366 = vmatpush1.msra.mxu0 %v335
  %367 = vmatprep.subr.mxu0 0.0
  %368 = vmatpush1.msra.mxu0 %v334
  %369 = vmatprep.subr.mxu0 0.0
  %370 = vmatpush1.msra.mxu0 %v333
  %371 = vmatprep.subr.mxu0 0.0
  %372 = vmatpush1.msra.mxu0 %v332
  %373 = vmatprep.subr.mxu0 0.0
  %374 = vmatpush1.msra.mxu0 %v331
  %375 = vmatprep.subr.mxu0 0.0
  %376 = vmatpush1.msra.mxu0 %v330
  %377 = vmatprep.subr.mxu0 0.0
  %378 = vmatpush1.msra.mxu0 %v329
  %379 = vmatprep.subr.mxu0 0.0
  %380 = vmatpush2.msra.mxu0 0.0
  %381 = vmatprep.subr.mxu0 0.0
  %382 = vmatpush2.msra.mxu0 0.0
  %383 = vmatprep.subr.mxu0 0.0
  %384 = vmatpush2.msra.mxu0 0.0
  %385 = vmatprep.subr.mxu0 0.0
  %386 = vmatpush2.msra.mxu0 0.0
  %387 = vmatprep.subr.mxu0 0.0
  %388 = vmatpush2.msra.mxu0 0.0
  %389 = vmatprep.subr.mxu0 0.0
  %390 = vmatpush2.msra.mxu0 0.0
  %391 = vmatprep.subr.mxu0 0.0
  %392 = vmatpush2.msra.mxu0 0.0
  %393 = vmatprep.subr.mxu0 0.0
  %394 = vmatpush2.msra.mxu0 0.0
  %395 = vmatprep.subr.mxu0 0.0
  %396 = vmatpush2.msra.mxu0 0.0
  %397 = vmatprep.subr.mxu0 0.0
  %398 = vmatpush2.msra.mxu0 0.0
  %399 = vmatprep.subr.mxu0 0.0
  %400 = vmatpush2.msra.mxu0 0.0
  %401 = vmatprep.subr.mxu0 0.0
  %402 = vmatpush2.msra.mxu0 0.0
  %403 = vmatprep.subr.mxu0 0.0
  %404 = vmatpush2.msra.mxu0 0.0
  %405 = vmatprep.subr.mxu0 0.0
  %406 = vmatpush2.msra.mxu0 0.0
  %407 = vmatprep.subr.mxu0 0.0
  %408 = vmatpush2.msra.mxu0 0.0
  %409 = vmatprep.subr.mxu0 0.0
  %410 = vmatpush2.msra.mxu0 0.0
  %411 = vmatprep.mubr.f32.mxu0 0.0
  %412 = vmatmul.mubr.f32.gmra.mxu0 %v345
  %v413 = vpop.f32.mrf.mxu0
  %v414 = vadd.f32 %v342, %v413
  %v415 = vpop.f32.mrf.mxu0
  %416 = vdwg.mxu0
  %vm417 = vcmask 31744
  %v418 = vsel %vm417, %v414, -inf
  %419 = vmax.xlane.f32.xlu0 %v418
  %v420 = vpop.xlane.xlu0 %419
  %v421 = vsub.f32 %v414, %v420
  %v422 = vmul.f32 %v421, 1.442695
  %v423 = vpow.pop %v422
  %v424 = vsel %vm417, %v423, 0.0
  %425 = vadd.xlane.f32.xlu0 %v424
  %v426 = vpop.xlane.xlu0 %425
  %v427 = vrcp.pop %v426
  %v428 = vmul.f32 %v423, %v427
  %429 = vst.msk [vmem:[%s17] sm:$0xff] %vm417, %v428
  %v430 = vld [vmem:[%s9] sm:$0xff]
  %v431 = vld [vmem:[%s9 + $0x8] sm:$0xff]
  %v432 = vld [vmem:[%s10] sm:$0x1]
  %v434 = vlaneseq
  %v435 = vshrl.u32 %v434, 7
  %v436 = vsub.s32 0, %v435
  %v437 = vrot.slane %v432, %v436
  %439 = vmatprep.subr.mxu0 0.0
  %440 = vmatpush1.msra.mxu0 0.0
  %441 = vmatprep.subr.mxu0 0.0
  %442 = vmatpush1.msra.mxu0 0.0
  %443 = vmatprep.subr.mxu0 0.0
  %444 = vmatpush1.msra.mxu0 0.0
  %445 = vmatprep.subr.mxu0 0.0
  %446 = vmatpush1.msra.mxu0 0.0
  %447 = vmatprep.subr.mxu0 0.0
  %448 = vmatpush1.msra.mxu0 0.0
  %449 = vmatprep.subr.mxu0 0.0
  %450 = vmatpush1.msra.mxu0 0.0
  %451 = vmatprep.subr.mxu0 0.0
  %452 = vmatpush1.msra.mxu0 0.0
  %453 = vmatprep.subr.mxu0 0.0
  %454 = vmatpush1.msra.mxu0 0.0
  %455 = vmatprep.subr.mxu0 0.0
  %456 = vmatpush1.msra.mxu0 0.0
  %457 = vmatprep.subr.mxu0 0.0
  %458 = vmatpush1.msra.mxu0 0.0
  %459 = vmatprep.subr.mxu0 0.0
  %460 = vmatpush1.msra.mxu0 0.0
  %461 = vmatprep.subr.mxu0 0.0
  %462 = vmatpush1.msra.mxu0 0.0
  %463 = vmatprep.subr.mxu0 0.0
  %464 = vmatpush1.msra.mxu0 0.0
  %465 = vmatprep.subr.mxu0 0.0
  %466 = vmatpush1.msra.mxu0 0.0
  %467 = vmatprep.subr.mxu0 0.0
  %468 = vmatpush1.msra.mxu0 %v431
  %469 = vmatprep.subr.mxu0 0.0
  %470 = vmatpush1.msra.mxu0 %v430
  %471 = vmatprep.subr.mxu0 0.0
  %472 = vmatpush2.msra.mxu0 0.0
  %473 = vmatprep.subr.mxu0 0.0
  %474 = vmatpush2.msra.mxu0 0.0
  %475 = vmatprep.subr.mxu0 0.0
  %476 = vmatpush2.msra.mxu0 0.0
  %477 = vmatprep.subr.mxu0 0.0
  %478 = vmatpush2.msra.mxu0 0.0
  %479 = vmatprep.subr.mxu0 0.0
  %480 = vmatpush2.msra.mxu0 0.0
  %481 = vmatprep.subr.mxu0 0.0
  %482 = vmatpush2.msra.mxu0 0.0
  %483 = vmatprep.subr.mxu0 0.0
  %484 = vmatpush2.msra.mxu0 0.0
  %485 = vmatprep.subr.mxu0 0.0
  %486 = vmatpush2.msra.mxu0 0.0
  %487 = vmatprep.subr.mxu0 0.0
  %488 = vmatpush2.msra.mxu0 0.0
  %489 = vmatprep.subr.mxu0 0.0
  %490 = vmatpush2.msra.mxu0 0.0
  %491 = vmatprep.subr.mxu0 0.0
  %492 = vmatpush2.msra.mxu0 0.0
  %493 = vmatprep.subr.mxu0 0.0
  %494 = vmatpush2.msra.mxu0 0.0
  %495 = vmatprep.subr.mxu0 0.0
  %496 = vmatpush2.msra.mxu0 0.0
  %497 = vmatprep.subr.mxu0 0.0
  %498 = vmatpush2.msra.mxu0 0.0
  %499 = vmatprep.subr.mxu0 0.0
  %500 = vmatpush2.msra.mxu0 0.0
  %501 = vmatprep.subr.mxu0 0.0
  %502 = vmatpush2.msra.mxu0 0.0
  %503 = vmatprep.mubr.f32.mxu0 0.0
  %504 = vmatmul.mubr.f32.gmra.mxu0 %v72
  %v505 = vpop.f32.mrf.mxu0
  %v506 = vadd.f32 %v437, %v505
  %v507 = vpop.f32.mrf.mxu0
  %508 = vdwg.mxu0
  %v509 = vmax.f32 %v506, 0.0
  %v510 = vld [vmem:[%s11] sm:$0xff]
  %v511 = vld [vmem:[%s11 + $0x8] sm:$0xff]
  %v512 = vld [vmem:[%s11 + $0x10] sm:$0xff]
  %v513 = vld [vmem:[%s11 + $0x18] sm:$0xff]
  %v514 = vld [vmem:[%s11 + $0x20] sm:$0xff]
  %v515 = vld [vmem:[%s11 + $0x28] sm:$0xff]
  %v516 = vld [vmem:[%s11 + $0x30] sm:$0xff]
  %v517 = vld [vmem:[%s11 + $0x38] sm:$0xff]
  %v518 = vld [vmem:[%s12] sm:$0x1]
  %v520 = vlaneseq
  %v521 = vshrl.u32 %v520, 7
  %v522 = vsub.s32 0, %v521
  %v523 = vrot.slane %v518, %v522
  %v526 = vsel %vm254, %v509, 0
  %528 = vmatprep.subr.mxu0 0.0
  %529 = vmatpush1.msra.mxu0 0.0
  %530 = vmatprep.subr.mxu0 0.0
  %531 = vmatpush1.msra.mxu0 0.0
  %532 = vmatprep.subr.mxu0 0.0
  %533 = vmatpush1.msra.mxu0 0.0
  %534 = vmatprep.subr.mxu0 0.0
  %535 = vmatpush1.msra.mxu0 0.0
  %536 = vmatprep.subr.mxu0 0.0
  %537 = vmatpush1.msra.mxu0 0.0
  %538 = vmatprep.subr.mxu0 0.0
  %539 = vmatpush1.msra.mxu0 0.0
  %540 = vmatprep.subr.mxu0 0.0
  %541 = vmatpush1.msra.mxu0 0.0
  %542 = vmatprep.subr.mxu0 0.0
  %543 = vmatpush1.msra.mxu0 0.0
  %544 = vmatprep.subr.mxu0 0.0
  %545 = vmatpush1.msra.mxu0 %v517
  %546 = vmatprep.subr.mxu0 0.0
  %547 = vmatpush1.msra.mxu0 %v516
  %548 = vmatprep.subr.mxu0 0.0
  %549 = vmatpush1.msra.mxu0 %v515
  %550 = vmatprep.subr.mxu0 0.0
  %551 = vmatpush1.msra.mxu0 %v514
  %552 = vmatprep.subr.mxu0 0.0
  %553 = vmatpush1.msra.mxu0 %v513
  %554 = vmatprep.subr.mxu0 0.0
  %555 = vmatpush1.msra.mxu0 %v512
  %556 = vmatprep.subr.mxu0 0.0
  %557 = vmatpush1.msra.mxu0 %v511
  %558 = vmatprep.subr.mxu0 0.0
  %559 = vmatpush1.msra.mxu0 %v510
  %560 = vmatprep.subr.mxu0 0.0
  %561 = vmatpush2.msra.mxu0 0.0
  %562 = vmatprep.subr.mxu0 0.0
  %563 = vmatpush2.msra.mxu0 0.0
  %564 = vmatprep.subr.mxu0 0.0
  %565 = vmatpush2.msra.mxu0 0.0
  %566 = vmatprep.subr.mxu0 0.0
  %567 = vmatpush2.msra.mxu0 0.0
  %568 = vmatprep.subr.mxu0 0.0
  %569 = vmatpush2.msra.mxu0 0.0
  %570 = vmatprep.subr.mxu0 0.0
  %571 = vmatpush2.msra.mxu0 0.0
  %572 = vmatprep.subr.mxu0 0.0
  %573 = vmatpush2.msra.mxu0 0.0
  %574 = vmatprep.subr.mxu0 0.0
  %575 = vmatpush2.msra.mxu0 0.0
  %576 = vmatprep.subr.mxu0 0.0
  %577 = vmatpush2.msra.mxu0 0.0
  %578 = vmatprep.subr.mxu0 0.0
  %579 = vmatpush2.msra.mxu0 0.0
  %580 = vmatprep.subr.mxu0 0.0
  %581 = vmatpush2.msra.mxu0 0.0
  %582 = vmatprep.subr.mxu0 0.0
  %583 = vmatpush2.msra.mxu0 0.0
  %584 = vmatprep.subr.mxu0 0.0
  %585 = vmatpush2.msra.mxu0 0.0
  %586 = vmatprep.subr.mxu0 0.0
  %587 = vmatpush2.msra.mxu0 0.0
  %588 = vmatprep.subr.mxu0 0.0
  %589 = vmatpush2.msra.mxu0 0.0
  %590 = vmatprep.subr.mxu0 0.0
  %591 = vmatpush2.msra.mxu0 0.0
  %592 = vmatprep.mubr.f32.mxu0 0.0
  %593 = vmatmul.mubr.f32.gmra.mxu0 %v526
  %v594 = vpop.f32.mrf.mxu0
  %v595 = vadd.f32 %v523, %v594
  %v596 = vpop.f32.mrf.mxu0
  %597 = vdwg.mxu0
  %v598 = vmax.f32 %v595, 0.0
  %v599 = vld [vmem:[%s13] sm:$0xff]
  %v600 = vld [vmem:[%s13 + $0x8] sm:$0xff]
  %v601 = vld [vmem:[%s13 + $0x10] sm:$0xff]
  %v602 = vld [vmem:[%s13 + $0x18] sm:$0xff]
  %v603 = vld [vmem:[%s13 + $0x20] sm:$0xff]
  %v604 = vld [vmem:[%s13 + $0x28] sm:$0xff]
  %v605 = vld [vmem:[%s13 + $0x30] sm:$0xff]
  %v606 = vld [vmem:[%s13 + $0x38] sm:$0xff]
  %v607 = vld [vmem:[%s14] sm:$0x1]
  %v609 = vlaneseq
  %v610 = vshrl.u32 %v609, 7
  %v611 = vsub.s32 0, %v610
  %v612 = vrot.slane %v607, %v611
  %v615 = vsel %vm254, %v598, 0
  %617 = vmatprep.subr.mxu0 0.0
  %618 = vmatpush1.msra.mxu0 0.0
  %619 = vmatprep.subr.mxu0 0.0
  %620 = vmatpush1.msra.mxu0 0.0
  %621 = vmatprep.subr.mxu0 0.0
  %622 = vmatpush1.msra.mxu0 0.0
  %623 = vmatprep.subr.mxu0 0.0
  %624 = vmatpush1.msra.mxu0 0.0
  %625 = vmatprep.subr.mxu0 0.0
  %626 = vmatpush1.msra.mxu0 0.0
  %627 = vmatprep.subr.mxu0 0.0
  %628 = vmatpush1.msra.mxu0 0.0
  %629 = vmatprep.subr.mxu0 0.0
  %630 = vmatpush1.msra.mxu0 0.0
  %631 = vmatprep.subr.mxu0 0.0
  %632 = vmatpush1.msra.mxu0 0.0
  %633 = vmatprep.subr.mxu0 0.0
  %634 = vmatpush1.msra.mxu0 %v606
  %635 = vmatprep.subr.mxu0 0.0
  %636 = vmatpush1.msra.mxu0 %v605
  %637 = vmatprep.subr.mxu0 0.0
  %638 = vmatpush1.msra.mxu0 %v604
  %639 = vmatprep.subr.mxu0 0.0
  %640 = vmatpush1.msra.mxu0 %v603
  %641 = vmatprep.subr.mxu0 0.0
  %642 = vmatpush1.msra.mxu0 %v602
  %643 = vmatprep.subr.mxu0 0.0
  %644 = vmatpush1.msra.mxu0 %v601
  %645 = vmatprep.subr.mxu0 0.0
  %646 = vmatpush1.msra.mxu0 %v600
  %647 = vmatprep.subr.mxu0 0.0
  %648 = vmatpush1.msra.mxu0 %v599
  %649 = vmatprep.subr.mxu0 0.0
  %650 = vmatpush2.msra.mxu0 0.0
  %651 = vmatprep.subr.mxu0 0.0
  %652 = vmatpush2.msra.mxu0 0.0
  %653 = vmatprep.subr.mxu0 0.0
  %654 = vmatpush2.msra.mxu0 0.0
  %655 = vmatprep.subr.mxu0 0.0
  %656 = vmatpush2.msra.mxu0 0.0
  %657 = vmatprep.subr.mxu0 0.0
  %658 = vmatpush2.msra.mxu0 0.0
  %659 = vmatprep.subr.mxu0 0.0
  %660 = vmatpush2.msra.mxu0 0.0
  %661 = vmatprep.subr.mxu0 0.0
  %662 = vmatpush2.msra.mxu0 0.0
  %663 = vmatprep.subr.mxu0 0.0
  %664 = vmatpush2.msra.mxu0 0.0
  %665 = vmatprep.subr.mxu0 0.0
  %666 = vmatpush2.msra.mxu0 0.0
  %667 = vmatprep.subr.mxu0 0.0
  %668 = vmatpush2.msra.mxu0 0.0
  %669 = vmatprep.subr.mxu0 0.0
  %670 = vmatpush2.msra.mxu0 0.0
  %671 = vmatprep.subr.mxu0 0.0
  %672 = vmatpush2.msra.mxu0 0.0
  %673 = vmatprep.subr.mxu0 0.0
  %674 = vmatpush2.msra.mxu0 0.0
  %675 = vmatprep.subr.mxu0 0.0
  %676 = vmatpush2.msra.mxu0 0.0
  %677 = vmatprep.subr.mxu0 0.0
  %678 = vmatpush2.msra.mxu0 0.0
  %679 = vmatprep.subr.mxu0 0.0
  %680 = vmatpush2.msra.mxu0 0.0
  %681 = vmatprep.mubr.f32.mxu0 0.0
  %682 = vmatmul.mubr.f32.gmra.mxu0 %v615
  %v683 = vpop.f32.mrf.mxu0
  %v684 = vadd.f32 %v612, %v683
  %v685 = vpop.f32.mrf.mxu0
  %686 = vdwg.mxu0
  %v687 = vmax.f32 %v684, 0.0
  %v688 = vld [vmem:[%s15] sm:$0xff]
  %v689 = vld [vmem:[%s15 + $0x8] sm:$0xff]
  %v690 = vld [vmem:[%s15 + $0x10] sm:$0xff]
  %v691 = vld [vmem:[%s15 + $0x18] sm:$0xff]
  %v692 = vld [vmem:[%s15 + $0x20] sm:$0xff]
  %v693 = vld [vmem:[%s15 + $0x28] sm:$0xff]
  %v694 = vld [vmem:[%s15 + $0x30] sm:$0xff]
  %v695 = vld [vmem:[%s15 + $0x38] sm:$0xff]
  %v696 = vld [vmem:[#allocation2] sm:$0x1]
  %v698 = vlaneseq
  %v699 = vshrl.u32 %v698, 7
  %v700 = vsub.s32 0, %v699
  %v701 = vrot.slane %v696, %v700
  %v704 = vsel %vm254, %v687, 0
  %706 = vmatprep.subr.mxu0 0.0
  %707 = vmatpush1.msra.mxu0 0.0
  %708 = vmatprep.subr.mxu0 0.0
  %709 = vmatpush1.msra.mxu0 0.0
  %710 = vmatprep.subr.mxu0 0.0
  %711 = vmatpush1.msra.mxu0 0.0
  %712 = vmatprep.subr.mxu0 0.0
  %713 = vmatpush1.msra.mxu0 0.0
  %714 = vmatprep.subr.mxu0 0.0
  %715 = vmatpush1.msra.mxu0 0.0
  %716 = vmatprep.subr.mxu0 0.0
  %717 = vmatpush1.msra.mxu0 0.0
  %718 = vmatprep.subr.mxu0 0.0
  %719 = vmatpush1.msra.mxu0 0.0
  %720 = vmatprep.subr.mxu0 0.0
  %721 = vmatpush1.msra.mxu0 0.0
  %722 = vmatprep.subr.mxu0 0.0
  %723 = vmatpush1.msra.mxu0 %v695
  %724 = vmatprep.subr.mxu0 0.0
  %725 = vmatpush1.msra.mxu0 %v694
  %726 = vmatprep.subr.mxu0 0.0
  %727 = vmatpush1.msra.mxu0 %v693
  %728 = vmatprep.subr.mxu0 0.0
  %729 = vmatpush1.msra.mxu0 %v692
  %730 = vmatprep.subr.mxu0 0.0
  %731 = vmatpush1.msra.mxu0 %v691
  %732 = vmatprep.subr.mxu0 0.0
  %733 = vmatpush1.msra.mxu0 %v690
  %734 = vmatprep.subr.mxu0 0.0
  %735 = vmatpush1.msra.mxu0 %v689
  %736 = vmatprep.subr.mxu0 0.0
  %737 = vmatpush1.msra.mxu0 %v688
  %738 = vmatprep.subr.mxu0 0.0
  %739 = vmatpush2.msra.mxu0 0.0
  %740 = vmatprep.subr.mxu0 0.0
  %741 = vmatpush2.msra.mxu0 0.0
  %742 = vmatprep.subr.mxu0 0.0
  %743 = vmatpush2.msra.mxu0 0.0
  %744 = vmatprep.subr.mxu0 0.0
  %745 = vmatpush2.msra.mxu0 0.0
  %746 = vmatprep.subr.mxu0 0.0
  %747 = vmatpush2.msra.mxu0 0.0
  %748 = vmatprep.subr.mxu0 0.0
  %749 = vmatpush2.msra.mxu0 0.0
  %750 = vmatprep.subr.mxu0 0.0
  %751 = vmatpush2.msra.mxu0 0.0
  %752 = vmatprep.subr.mxu0 0.0
  %753 = vmatpush2.msra.mxu0 0.0
  %754 = vmatprep.subr.mxu0 0.0
  %755 = vmatpush2.msra.mxu0 0.0
  %756 = vmatprep.subr.mxu0 0.0
  %757 = vmatpush2.msra.mxu0 0.0
  %758 = vmatprep.subr.mxu0 0.0
  %759 = vmatpush2.msra.mxu0 0.0
  %760 = vmatprep.subr.mxu0 0.0
  %761 = vmatpush2.msra.mxu0 0.0
  %762 = vmatprep.subr.mxu0 0.0
  %763 = vmatpush2.msra.mxu0 0.0
  %764 = vmatprep.subr.mxu0 0.0
  %765 = vmatpush2.msra.mxu0 0.0
  %766 = vmatprep.subr.mxu0 0.0
  %767 = vmatpush2.msra.mxu0 0.0
  %768 = vmatprep.subr.mxu0 0.0
  %769 = vmatpush2.msra.mxu0 0.0
  %770 = vmatprep.mubr.f32.mxu0 0.0
  %771 = vmatmul.mubr.f32.gmra.mxu0 %v704
  %v772 = vpop.f32.mrf.mxu0
  %v773 = vadd.f32 %v701, %v772
  %v774 = vpop.f32.mrf.mxu0
  %775 = vdwg.mxu0
  %vm776 = vcmask 7168
  %777 = vst.msk [vmem:[%s18] sm:$0xff] %vm776, %v773
  // Predicated region
  $region70: #{_fused_forward.1} parent=0 // pred_check
    _
  $region71: #{_fused_forward.1} parent=0 // pred_check_branch
    %779 = sbr.rel (0) target = $region73
  $region72: #{_fused_forward.1} parent=0 // pred_region
    _
  $region73: #{_fused_forward.1} parent=0 // pred_fallthru
    _
  // Predicated region
  $region74: #{_fused_forward.1} parent=0 // pred_check
    _
  $region75: #{_fused_forward.1} parent=0 // pred_check_branch
    %781 = sbr.rel (0) target = $region77
  $region76: #{_fused_forward.1} parent=0 // pred_region
    _
  $region77: #{_fused_forward.1} parent=0 // pred_fallthru
    _
  // Predicated region
  $region78: #{_fused_forward.1} parent=0 // pred_check
    _
  $region79: #{_fused_forward.1} parent=0 // pred_check_branch
    %783 = sbr.rel (0) target = $region81
  $region80: #{_fused_forward.1} parent=0 // pred_region
    _
  $region81: #{_fused_forward.1} parent=0 // pred_fallthru
    _
  // Predicated region
  $region82: #{_fused_forward.1} parent=0 // pred_check
    _
  $region83: #{_fused_forward.1} parent=0 // pred_check_branch
    %785 = sbr.rel (0) target = $region85
  $region84: #{_fused_forward.1} parent=0 // pred_region
    _
  $region85: #{_fused_forward.1} parent=0 // pred_fallthru
    _

</llo_original>
